<compile_context>
chip_gen: v7x
topology: tpu7x:2x2x1
jax: 0.10.0
libtpu: 0.0.40
codegen_flags: <defaults>
</compile_context>

<pallas_src>
import functools

import jax
import jax.numpy as jnp
from jax.experimental import pallas as pl
from jax.experimental.pallas import tpu as pltpu


# ----------------------------- Pallas kernel ------------------------------ #
def _basis_pool_kernel(scale_ref, x_ref, o_ref, *, K, P):
    # scale_ref: (K,) SMEM   (1x1-conv weight / temperature, bias dropped)
    # x_ref:     (P, Rt, 128) VMEM     o_ref: (K, Rt, 128) VMEM
    # Shared across all k: per-window max and min of the raw values.
    x0 = x_ref[0].astype(jnp.float32)
    mx = x0
    mn = x0
    for p in range(1, P):                       # P small & static -> unrolled
        xp = x_ref[p].astype(jnp.float32)
        mx = jnp.maximum(mx, xp)
        mn = jnp.minimum(mn, xp)

    for k in range(K):                          # K small & static -> unrolled
        sc = scale_ref[k]
        # max_p(sc * x_p) for either sign of sc  (exact)
        m = jnp.maximum(mx * sc, mn * sc)       # (Rt, 128) dense
        z = None
        num = None
        for p in range(P):                      # streamed: no full e/ex tiles
            # reload from VMEM (vld slots are plentiful) -> low vreg pressure
            xp = x_ref[p].astype(jnp.float32)
            e = jnp.exp(xp * sc - m)            # EUP, full (8,128) vregs
            z = e if z is None else z + e
            w = e * xp
            num = w if num is None else num + w
        # softmax divide replaced by weighted-sum * approximate reciprocal
        o_ref[k] = (num * pl.reciprocal(z, approx=True)).astype(o_ref.dtype)


# ------------------------------- wrapper ----------------------------------- #
def _unfold_flat(x, kernel_size, stride):
    """(B,C,H,W) -> (P, N) window-element planes via strided slices (no gather)."""
    B, C, H, W = x.shape
    kh, kw = kernel_size
    sh, sw = stride
    out_h = (H - kh) // sh + 1
    out_w = (W - kw) // sw + 1
    N = B * C * out_h * out_w
    planes = []
    for dh in range(kh):
        for dw in range(kw):
            plane = jax.lax.slice(
                x, (0, 0, dh, dw),
                (B, C, dh + (out_h - 1) * sh + 1, dw + (out_w - 1) * sw + 1),
                (1, 1, sh, sw))                       # (B, C, out_h, out_w)
            planes.append(plane.reshape(N))
    return jnp.stack(planes, axis=0), out_h, out_w, N  # (P, N)


@functools.partial(jax.jit, static_argnames=("kernel_size", "stride", "basis_dim"))
def basis_pooling_pallas(x, proj_w, proj_b, temperature, kernel_size, stride,
                         basis_dim):
    """x: (B, C, H, W) NCHW (matches PyTorch).  Returns (B, C*K, out_h, out_w)."""
    del proj_b  # softmax is shift-invariant within a window: the 1x1-conv bias
                # cancels exactly, so it never needs to reach the kernel.
    B, C, H, W = x.shape
    kh, kw = kernel_size
    P = kh * kw
    K = basis_dim

    patches, out_h, out_w, N = _unfold_flat(x, kernel_size, stride)
    # TODO(synk): for stride == kernel_size the unfold could be done fully
    # in-kernel (strided-lane window selection on a reshaped x view) to remove
    # this producer even when XLA input fusion does not fire.

    # bf16 sources stay bf16 for the DMA (half the HBM bytes); upcast in-kernel.
    feed_dtype = jnp.bfloat16 if x.dtype == jnp.bfloat16 else jnp.float32
    patches = patches.astype(feed_dtype)

    LANE, SUB = 128, 8
    N_pad = ((N + LANE - 1) // LANE) * LANE
    if N_pad != N:                  # <=127 tail elems; fuses into the unfold producer
        patches = jnp.pad(patches, ((0, 0), (0, N_pad - N)))
    R = N_pad // LANE
    patches = patches.reshape(P, R, LANE)   # free reshape: lane-dense 3-D layout

    # Fold temperature into the K projection weights (K scalars through SMEM).
    inv_t = 1.0 / jnp.asarray(temperature, jnp.float32).reshape(())
    scale = proj_w.reshape(K).astype(jnp.float32) * inv_t

    # ---- tile chooser: ~8K-lane tiles, >=8 pipelined steps when enough work --
    rt = min(64, R)                 # 64 rows x 128 lanes ~ 8K lanes per tile
    if R >= 8 * 16:                 # enough rows for >=8 steps of >=16 rows
        rt = min(rt, pl.cdiv(R, 8))
    rt = (rt // SUB) * SUB if rt >= SUB else R   # multiple of 8, or full-dim
    n_blocks = pl.cdiv(R, rt)       # Pallas masks the partial last block

    kernel = functools.partial(_basis_pool_kernel, K=K, P=P)
    out = pl.pallas_call(
        kernel,
        out_shape=jax.ShapeDtypeStruct((K, R, LANE), feed_dtype),
        grid=(n_blocks,),
        in_specs=[
            pl.BlockSpec(memory_space=pltpu.MemorySpace.SMEM),   # scale (K,)
            pl.BlockSpec((P, rt, LANE), lambda i: (0, i, 0)),    # patches tile
        ],
        out_specs=pl.BlockSpec((K, rt, LANE), lambda i: (0, i, 0)),
        compiler_params=pltpu.CompilerParams(
            dimension_semantics=("parallel",),
            # let XLA fuse the slice/stack unfold producer into the input DMA
            allow_input_fusion=[False, True],
            vmem_limit_bytes=32 * 1024 * 1024),
    )(scale, patches)

    # (K, R, 128) -> (B, C*K, out_h, out_w); PyTorch channel order is c*K + k.
    out = out.reshape(K, N_pad)[:, :N].reshape(K, B, C, out_h, out_w)
    out = jnp.transpose(out, (1, 2, 0, 3, 4)).reshape(B, C * K, out_h, out_w)
    return out.astype(x.dtype)


# --------------------------- pure-JAX reference ---------------------------- #
def basis_pooling_ref(x, proj_w, proj_b, temperature, kernel_size, stride,
                      basis_dim):
    B, C, H, W = x.shape
    kh, kw = kernel_size
    sh, sw = stride
    out_h = (H - kh) // sh + 1
    out_w = (W - kw) // sw + 1
    K = basis_dim
    hi = (jnp.arange(out_h) * sh)[:, None] + jnp.arange(kh)[None, :]
    wi = (jnp.arange(out_w) * sw)[:, None] + jnp.arange(kw)[None, :]
    A = hi[:, None, :, None]
    Bi = wi[None, :, None, :]
    patches = x[:, :, A, Bi].reshape(B, C, out_h * out_w, kh * kw)   # (B,C,L,P)
    w = proj_w.reshape(K)
    b = proj_b.reshape(K)
    scores = patches[..., None, :] * w[None, None, None, :, None] \
        + b[None, None, None, :, None]                               # (B,C,L,K,P)
    probs = jax.nn.softmax(scores / temperature, axis=-1)
    bv = jnp.sum(patches[..., None, :] * probs, axis=-1)             # (B,C,L,K)
    bv = jnp.transpose(bv, (0, 1, 3, 2)).reshape(B, C, K, out_h, out_w)
    return bv.reshape(B, C * K, out_h, out_w)


# --------------------------------- main ------------------------------------ #
if __name__ == "__main__":
    key = jax.random.PRNGKey(0)
    kx, kw_, kb_ = jax.random.split(key, 3)

    B, C, H, W = 2, 4, 16, 16
    kernel_size = (2, 2)
    stride = (2, 2)
    basis_dim = 2
    temperature = 0.1

    x = jax.random.normal(kx, (B, C, H, W), dtype=jnp.float32)
    # Conv2d(1, basis_dim, kernel_size=1, bias=True) parameters (deterministic)
    proj_w = jax.random.normal(kw_, (basis_dim, 1, 1, 1), dtype=jnp.float32) * 0.5
    proj_b = jax.random.normal(kb_, (basis_dim,), dtype=jnp.float32) * 0.1

    out = basis_pooling_pallas(x, proj_w, proj_b, temperature,
                               kernel_size=kernel_size, stride=stride,
                               basis_dim=basis_dim)
    out = jax.block_until_ready(out)

    ref = basis_pooling_ref(x, proj_w, proj_b, temperature, kernel_size,
                            stride, basis_dim)
    assert out.shape == (B, C * basis_dim, 8, 8), out.shape
    # pl.reciprocal(approx=True) bounds agreement to ~1e-3 (z >= 1 always, so
    # the approximation is well-conditioned); tolerance set accordingly.
    assert jnp.allclose(out, ref, atol=1e-2, rtol=1e-2), \
        float(jnp.max(jnp.abs(out - ref)))

    print("KERNEL_OK")
</pallas_src>

<mosaic_0001>
module attributes {stable_mosaic.version = 11 : i64} {
  func.func @_basis_pool_kernel(%arg0: i32, %arg1: memref<2xf32, #tpu.memory_space<smem>>, %arg2: memref<4x4x128xf32, #tpu.memory_space<vmem>>, %arg3: memref<2x4x128xf32, #tpu.memory_space<vmem>>) attributes {dimension_semantics = [#tpu.dimension_semantics<parallel>], iteration_bounds = array<i64: 1>, scalar_prefetch = 0 : i64, scratch_operands = 0 : i64, tpu.core_type = #tpu.core_type<tc>, window_params = [{transform_indices = @transform_0, window_bounds = array<i64: 2>}, {transform_indices = @transform_1, window_bounds = array<i64: 4, 4, 128>}, {transform_indices = @transform_2, window_bounds = array<i64: 2, 4, 128>}]} {
    %c0 = arith.constant 0 : index
    %c0_0 = arith.constant 0 : index
    %c0_1 = arith.constant 0 : index
    %0 = vector.load %arg2[%c0, %c0_0, %c0_1] : memref<4x4x128xf32, #tpu.memory_space<vmem>>, vector<1x4x128xf32>
    %1 = vector.shape_cast %0 : vector<1x4x128xf32> to vector<4x128xf32>
    %c1 = arith.constant 1 : index
    %c0_2 = arith.constant 0 : index
    %c0_3 = arith.constant 0 : index
    %2 = vector.load %arg2[%c1, %c0_2, %c0_3] : memref<4x4x128xf32, #tpu.memory_space<vmem>>, vector<1x4x128xf32>
    %3 = vector.shape_cast %2 : vector<1x4x128xf32> to vector<4x128xf32>
    %4 = arith.maximumf %1, %3 : vector<4x128xf32>
    %5 = arith.minimumf %1, %3 : vector<4x128xf32>
    %c2 = arith.constant 2 : index
    %c0_4 = arith.constant 0 : index
    %c0_5 = arith.constant 0 : index
    %6 = vector.load %arg2[%c2, %c0_4, %c0_5] : memref<4x4x128xf32, #tpu.memory_space<vmem>>, vector<1x4x128xf32>
    %7 = vector.shape_cast %6 : vector<1x4x128xf32> to vector<4x128xf32>
    %8 = arith.maximumf %4, %7 : vector<4x128xf32>
    %9 = arith.minimumf %5, %7 : vector<4x128xf32>
    %c3 = arith.constant 3 : index
    %c0_6 = arith.constant 0 : index
    %c0_7 = arith.constant 0 : index
    %10 = vector.load %arg2[%c3, %c0_6, %c0_7] : memref<4x4x128xf32, #tpu.memory_space<vmem>>, vector<1x4x128xf32>
    %11 = vector.shape_cast %10 : vector<1x4x128xf32> to vector<4x128xf32>
    %12 = arith.maximumf %8, %11 : vector<4x128xf32>
    %13 = arith.minimumf %9, %11 : vector<4x128xf32>
    %c0_8 = arith.constant 0 : index
    %14 = memref.load %arg1[%c0_8] : memref<2xf32, #tpu.memory_space<smem>>
    %15 = vector.broadcast %14 : f32 to vector<4x128xf32>
    %16 = arith.mulf %12, %15 : vector<4x128xf32>
    %17 = vector.broadcast %14 : f32 to vector<4x128xf32>
    %18 = arith.mulf %13, %17 : vector<4x128xf32>
    %19 = arith.maximumf %16, %18 : vector<4x128xf32>
    %c0_9 = arith.constant 0 : index
    %c0_10 = arith.constant 0 : index
    %c0_11 = arith.constant 0 : index
    %20 = vector.load %arg2[%c0_9, %c0_10, %c0_11] : memref<4x4x128xf32, #tpu.memory_space<vmem>>, vector<1x4x128xf32>
    %21 = vector.shape_cast %20 : vector<1x4x128xf32> to vector<4x128xf32>
    %22 = vector.broadcast %14 : f32 to vector<4x128xf32>
    %23 = arith.mulf %21, %22 : vector<4x128xf32>
    %24 = arith.subf %23, %19 : vector<4x128xf32>
    %25 = math.exp %24 : vector<4x128xf32>
    %26 = arith.mulf %25, %21 : vector<4x128xf32>
    %c1_12 = arith.constant 1 : index
    %c0_13 = arith.constant 0 : index
    %c0_14 = arith.constant 0 : index
    %27 = vector.load %arg2[%c1_12, %c0_13, %c0_14] : memref<4x4x128xf32, #tpu.memory_space<vmem>>, vector<1x4x128xf32>
    %28 = vector.shape_cast %27 : vector<1x4x128xf32> to vector<4x128xf32>
    %29 = vector.broadcast %14 : f32 to vector<4x128xf32>
    %30 = arith.mulf %28, %29 : vector<4x128xf32>
    %31 = arith.subf %30, %19 : vector<4x128xf32>
    %32 = math.exp %31 : vector<4x128xf32>
    %33 = arith.addf %25, %32 : vector<4x128xf32>
    %34 = arith.mulf %32, %28 : vector<4x128xf32>
    %35 = arith.addf %26, %34 : vector<4x128xf32>
    %c2_15 = arith.constant 2 : index
    %c0_16 = arith.constant 0 : index
    %c0_17 = arith.constant 0 : index
    %36 = vector.load %arg2[%c2_15, %c0_16, %c0_17] : memref<4x4x128xf32, #tpu.memory_space<vmem>>, vector<1x4x128xf32>
    %37 = vector.shape_cast %36 : vector<1x4x128xf32> to vector<4x128xf32>
    %38 = vector.broadcast %14 : f32 to vector<4x128xf32>
    %39 = arith.mulf %37, %38 : vector<4x128xf32>
    %40 = arith.subf %39, %19 : vector<4x128xf32>
    %41 = math.exp %40 : vector<4x128xf32>
    %42 = arith.addf %33, %41 : vector<4x128xf32>
    %43 = arith.mulf %41, %37 : vector<4x128xf32>
    %44 = arith.addf %35, %43 : vector<4x128xf32>
    %c3_18 = arith.constant 3 : index
    %c0_19 = arith.constant 0 : index
    %c0_20 = arith.constant 0 : index
    %45 = vector.load %arg2[%c3_18, %c0_19, %c0_20] : memref<4x4x128xf32, #tpu.memory_space<vmem>>, vector<1x4x128xf32>
    %46 = vector.shape_cast %45 : vector<1x4x128xf32> to vector<4x128xf32>
    %47 = vector.broadcast %14 : f32 to vector<4x128xf32>
    %48 = arith.mulf %46, %47 : vector<4x128xf32>
    %49 = arith.subf %48, %19 : vector<4x128xf32>
    %50 = math.exp %49 : vector<4x128xf32>
    %51 = arith.addf %42, %50 : vector<4x128xf32>
    %52 = arith.mulf %50, %46 : vector<4x128xf32>
    %53 = arith.addf %44, %52 : vector<4x128xf32>
    %54 = tpu.reciprocal %51 {approx = true} : vector<4x128xf32> -> vector<4x128xf32>
    %55 = arith.mulf %53, %54 : vector<4x128xf32>
    %c0_21 = arith.constant 0 : index
    %c0_22 = arith.constant 0 : index
    %c0_23 = arith.constant 0 : index
    %56 = vector.load %arg3[%c0_21, %c0_22, %c0_23] : memref<2x4x128xf32, #tpu.memory_space<vmem>>, vector<1x4x128xf32>
    %57 = vector.shape_cast %56 : vector<1x4x128xf32> to vector<4x128xf32>
    %58 = vector.shape_cast %55 : vector<4x128xf32> to vector<1x4x128xf32>
    tpu.vector_store %arg3[%c0_21, %c0_22, %c0_23], %58 {strides = array<i32>} : memref<2x4x128xf32, #tpu.memory_space<vmem>>, vector<1x4x128xf32>,
    %c1_24 = arith.constant 1 : index
    %59 = memref.load %arg1[%c1_24] : memref<2xf32, #tpu.memory_space<smem>>
    %60 = vector.broadcast %59 : f32 to vector<4x128xf32>
    %61 = arith.mulf %12, %60 : vector<4x128xf32>
    %62 = vector.broadcast %59 : f32 to vector<4x128xf32>
    %63 = arith.mulf %13, %62 : vector<4x128xf32>
    %64 = arith.maximumf %61, %63 : vector<4x128xf32>
    %c0_25 = arith.constant 0 : index
    %c0_26 = arith.constant 0 : index
    %c0_27 = arith.constant 0 : index
    %65 = vector.load %arg2[%c0_25, %c0_26, %c0_27] : memref<4x4x128xf32, #tpu.memory_space<vmem>>, vector<1x4x128xf32>
    %66 = vector.shape_cast %65 : vector<1x4x128xf32> to vector<4x128xf32>
    %67 = vector.broadcast %59 : f32 to vector<4x128xf32>
    %68 = arith.mulf %66, %67 : vector<4x128xf32>
    %69 = arith.subf %68, %64 : vector<4x128xf32>
    %70 = math.exp %69 : vector<4x128xf32>
    %71 = arith.mulf %70, %66 : vector<4x128xf32>
    %c1_28 = arith.constant 1 : index
    %c0_29 = arith.constant 0 : index
    %c0_30 = arith.constant 0 : index
    %72 = vector.load %arg2[%c1_28, %c0_29, %c0_30] : memref<4x4x128xf32, #tpu.memory_space<vmem>>, vector<1x4x128xf32>
    %73 = vector.shape_cast %72 : vector<1x4x128xf32> to vector<4x128xf32>
    %74 = vector.broadcast %59 : f32 to vector<4x128xf32>
    %75 = arith.mulf %73, %74 : vector<4x128xf32>
    %76 = arith.subf %75, %64 : vector<4x128xf32>
    %77 = math.exp %76 : vector<4x128xf32>
    %78 = arith.addf %70, %77 : vector<4x128xf32>
    %79 = arith.mulf %77, %73 : vector<4x128xf32>
    %80 = arith.addf %71, %79 : vector<4x128xf32>
    %c2_31 = arith.constant 2 : index
    %c0_32 = arith.constant 0 : index
    %c0_33 = arith.constant 0 : index
    %81 = vector.load %arg2[%c2_31, %c0_32, %c0_33] : memref<4x4x128xf32, #tpu.memory_space<vmem>>, vector<1x4x128xf32>
    %82 = vector.shape_cast %81 : vector<1x4x128xf32> to vector<4x128xf32>
    %83 = vector.broadcast %59 : f32 to vector<4x128xf32>
    %84 = arith.mulf %82, %83 : vector<4x128xf32>
    %85 = arith.subf %84, %64 : vector<4x128xf32>
    %86 = math.exp %85 : vector<4x128xf32>
    %87 = arith.addf %78, %86 : vector<4x128xf32>
    %88 = arith.mulf %86, %82 : vector<4x128xf32>
    %89 = arith.addf %80, %88 : vector<4x128xf32>
    %c3_34 = arith.constant 3 : index
    %c0_35 = arith.constant 0 : index
    %c0_36 = arith.constant 0 : index
    %90 = vector.load %arg2[%c3_34, %c0_35, %c0_36] : memref<4x4x128xf32, #tpu.memory_space<vmem>>, vector<1x4x128xf32>
    %91 = vector.shape_cast %90 : vector<1x4x128xf32> to vector<4x128xf32>
    %92 = vector.broadcast %59 : f32 to vector<4x128xf32>
    %93 = arith.mulf %91, %92 : vector<4x128xf32>
    %94 = arith.subf %93, %64 : vector<4x128xf32>
    %95 = math.exp %94 : vector<4x128xf32>
    %96 = arith.addf %87, %95 : vector<4x128xf32>
    %97 = arith.mulf %95, %91 : vector<4x128xf32>
    %98 = arith.addf %89, %97 : vector<4x128xf32>
    %99 = tpu.reciprocal %96 {approx = true} : vector<4x128xf32> -> vector<4x128xf32>
    %100 = arith.mulf %98, %99 : vector<4x128xf32>
    %c1_37 = arith.constant 1 : index
    %c0_38 = arith.constant 0 : index
    %c0_39 = arith.constant 0 : index
    %101 = vector.load %arg3[%c1_37, %c0_38, %c0_39] : memref<2x4x128xf32, #tpu.memory_space<vmem>>, vector<1x4x128xf32>
    %102 = vector.shape_cast %101 : vector<1x4x128xf32> to vector<4x128xf32>
    %103 = vector.shape_cast %100 : vector<4x128xf32> to vector<1x4x128xf32>
    tpu.vector_store %arg3[%c1_37, %c0_38, %c0_39], %103 {strides = array<i32>} : memref<2x4x128xf32, #tpu.memory_space<vmem>>, vector<1x4x128xf32>,
    return
  }
  func.func @transform_0(%arg0: i32) -> i32 {
    %c0_i32 = arith.constant 0 : i32
    %c0_i32_0 = arith.constant 0 : i32
    return %c0_i32 : i32
  }
  func.func @transform_1(%arg0: i32) -> (i32, i32, i32) {
    %c0_i32 = arith.constant 0 : i32
    %c0_i32_0 = arith.constant 0 : i32
    %c0_i32_1 = arith.constant 0 : i32
    return %c0_i32, %arg0, %c0_i32_0 : i32, i32, i32
  }
  func.func @transform_2(%arg0: i32) -> (i32, i32, i32) {
    %c0_i32 = arith.constant 0 : i32
    %c0_i32_0 = arith.constant 0 : i32
    %c0_i32_1 = arith.constant 0 : i32
    return %c0_i32, %arg0, %c0_i32_0 : i32, i32, i32
  }
}

</mosaic_0001>

<llo_original>
// kernel: basis_pooling_pallas.2
$region0: #{basis_pooling_pallas.2}
  #allocation0 [shape = 'u32[]', space=smem, size = 0x4, offset = 0x4, fixed_abs, tag = 'smem constant byte address 0x4 - core index']
  #allocation1 [shape = 'u32[144,128]{1,0:T(1,128)}', space=vmem, size = 0x12000, scoped, tag = 'internal scratch']
  #allocation2 [shape = 'u32[2048]{0}', space=vmem, size = 0x2000, scoped, tag = 'scoped memory for basis_pooling_pallas.2']
  #allocation3 [shape = 'u32[2048]{0}', space=vmem, size = 0x2000, scoped, tag = 'scoped memory for basis_pooling_pallas.2']
  #allocation4 [shape = 'u32[2048]{0}', space=vmem, size = 0x2000, scoped, tag = 'scoped memory for basis_pooling_pallas.2']
  #allocation5 [shape = 'u32[2048]{0}', space=vmem, size = 0x2000, scoped, tag = 'scoped memory for basis_pooling_pallas.2']
  #allocation6 [shape = 'u32[2048]{0}', space=vmem, size = 0x2000, scoped, tag = 'scoped memory for basis_pooling_pallas.2']
  #allocation7 [shape = 'u32[2048]{0}', space=vmem, size = 0x2000, scoped, tag = 'scoped memory for basis_pooling_pallas.2']
  #allocation8 [shape = 'u32[2048]{0}', space=vmem, size = 0x2000, scoped, tag = 'scoped memory for basis_pooling_pallas.2']
  #allocation9 [shape = 'u32[2048]{0}', space=vmem, size = 0x2000, scoped, tag = 'scoped memory for basis_pooling_pallas.2']
  #allocation10 [shape = 'u32[2048]{0}', space=vmem, size = 0x2000, scoped, tag = 'scoped memory for basis_pooling_pallas.2']
  #allocation11 [shape = 'u32[2048]{0}', space=vmem, size = 0x2000, scoped, tag = 'scoped memory for basis_pooling_pallas.2']
  #allocation12 [shape = 'u32[2048]{0}', space=vmem, size = 0x2000, scoped, tag = 'scoped memory for basis_pooling_pallas.2']
  #allocation13 [shape = 'u32[2048]{0}', space=vmem, size = 0x2000, scoped, tag = 'scoped memory for basis_pooling_pallas.2']
  #allocation14 [shape = 'u32[2048]{0}', space=vmem, size = 0x2000, scoped, tag = 'scoped memory for basis_pooling_pallas.2']
  #allocation15 [shape = 'u32[2048]{0}', space=vmem, size = 0x2000, scoped, tag = 'scoped memory for basis_pooling_pallas.2']
  #allocation16 [shape = 'u32[2048]{0}', space=vmem, size = 0x2000, scoped, tag = 'scoped memory for basis_pooling_pallas.2']
  #allocation17 [shape = 'u32[2048]{0}', space=vmem, size = 0x2000, scoped, tag = 'scoped memory for basis_pooling_pallas.2']
  #allocation18 [shape = 'u32[2048]{0}', space=vmem, size = 0x2000, scoped, tag = 'scoped memory for basis_pooling_pallas.2']
  #allocation19 [shape = 'u32[2048]{0}', space=vmem, size = 0x2000, scoped, tag = 'scoped memory for basis_pooling_pallas.2']
  #allocation20 [shape = 'u32[2048]{0}', space=vmem, size = 0x2000, scoped, tag = 'scoped memory for basis_pooling_pallas.2']
  #allocation21 [shape = 'u32[2048]{0}', space=vmem, size = 0x2000, scoped, tag = 'scoped memory for basis_pooling_pallas.2']
  %s0 = inlined_call_operand.vmem [shape: f32[2], index: 0, kind: input, shape index: {}]
  %s1 = inlined_call_operand.vmem [shape: f32[1,4,128], index: 1, kind: input, shape index: {}]
  %s2 = inlined_call_operand.<no memory space> [shape: f32[], index: 2, kind: input, shape index: {}]
  %s3 = inlined_call_operand.vmem [shape: f32[1,4,128], index: 3, kind: input, shape index: {}]
  %s4 = inlined_call_operand.vmem [shape: f32[1,4,128], index: 4, kind: input, shape index: {}]
  %s5 = inlined_call_operand.vmem [shape: f32[1,4,128], index: 5, kind: input, shape index: {}]
  %s6 = inlined_call_operand.vmem [shape: f32[2,4,128], index: 6, kind: output, shape index: {}]
  %s7 = sld [smem:[#allocation0]]
  $region34: #{basis_pooling_pallas.2} parent=0
    _
  %s9 = ssub.s32 1, %s7
  %s10 = scalar_select 0, %s9, %s7
  %v11 = vstv %s2
  %v12 = vstv %s2
  %v13 = vstv %s2
  %v14 = vstv %s2
  $region1: #{basis_pooling_pallas.2} parent=0
    #allocation22 [shape = 'u8[512]{0}', space=smem, size = 0x200, scoped, tag = 'input window, operand 0, single buffered']
    #allocation23 [shape = 's32[1]{0}', space=sflag, size = 0x4, scoped, tag = 'scoped memory for basis_pooling_pallas.2']
    #allocation24 [shape = 'u8[8192]{0}', space=vmem, size = 0x2000, dematerialized = true, scoped, tag = 'FusionAdapter Buffer %fusion.1 = f32[4,4,128]{2,1,0:T(4,128)} fusion(%param_1.6, %param_2.3, %param_3.4, %param_4.5, %param_5.2), kind=kLoop, calls=%fused_computation.1.clone, metadata={op_name="jit(basis_pooling_pallas)/concatenate" stack_frame_id=9}']
    %15 = vsyncpa [#allocation23], 0
    // Predicated region
    $region2: #{basis_pooling_pallas.2} parent=1 // pred_check
      _
    $region3: #{basis_pooling_pallas.2} parent=1 // pred_check_branch
      %17 = sbr.rel (0) target = $region5
    $region4: #{basis_pooling_pallas.2} parent=1 // pred_region
      %s19 = ssub.s32 16, 16
      %20 = vsyncadd [#allocation23], %s19
      %s22 = sshll.u32 %s0, 4
      %s23 = int_to_ptr.vmem [resolvable:$true] %s22
      %25 = dma.vmem_to_smem %s23, 16, [#allocation22], [#allocation23]
    $region5: #{basis_pooling_pallas.2} parent=1 // pred_fallthru
      _
    // Predicated region
    $region6: #{basis_pooling_pallas.2} parent=1 // pred_check
      _
    $region7: #{basis_pooling_pallas.2} parent=1 // pred_check_branch
      %27 = sbr.rel (0) target = $region9
    $region8: #{basis_pooling_pallas.2} parent=1 // pred_region
      %s29 = ssub.s32 1, 0
      %s30 = smul.u32 64, %s29
      %p31 = scmp.lt.s32.totalorder 0, 0
      %s32 = scalar_select %p31, 0, 0
      %s33 = smul.addr %s32, 4
      %s34 = scalar_lea.vmem %s1, %s33
      %s36 = ssub.s32 1, 0
      %s37 = smul.u32 64, %s36
    $region9: #{basis_pooling_pallas.2} parent=1 // pred_fallthru
      _
    // Predicated region
    $region10: #{basis_pooling_pallas.2} parent=1 // pred_check
      _
    $region11: #{basis_pooling_pallas.2} parent=1 // pred_check_branch
      %39 = sbr.rel (0) target = $region13
    $region12: #{basis_pooling_pallas.2} parent=1 // pred_region
      %s41 = ssub.s32 1, 0
      %s42 = smul.u32 64, %s41
      %p43 = scmp.lt.s32.totalorder 0, 0
      %s44 = scalar_select %p43, 0, 0
      %s45 = smul.addr %s44, 4
      %s46 = scalar_lea.vmem %s3, %s45
      %s48 = ssub.s32 1, 0
      %s49 = smul.u32 64, %s48
    $region13: #{basis_pooling_pallas.2} parent=1 // pred_fallthru
      _
    // Predicated region
    $region14: #{basis_pooling_pallas.2} parent=1 // pred_check
      _
    $region15: #{basis_pooling_pallas.2} parent=1 // pred_check_branch
      %51 = sbr.rel (0) target = $region17
    $region16: #{basis_pooling_pallas.2} parent=1 // pred_region
      %s53 = ssub.s32 1, 0
      %s54 = smul.u32 64, %s53
      %p55 = scmp.lt.s32.totalorder 0, 0
      %s56 = scalar_select %p55, 0, 0
      %s57 = smul.addr %s56, 4
      %s58 = scalar_lea.vmem %s4, %s57
      %s60 = ssub.s32 1, 0
      %s61 = smul.u32 64, %s60
    $region17: #{basis_pooling_pallas.2} parent=1 // pred_fallthru
      _
    // Predicated region
    $region18: #{basis_pooling_pallas.2} parent=1 // pred_check
      _
    $region19: #{basis_pooling_pallas.2} parent=1 // pred_check_branch
      %63 = sbr.rel (0) target = $region21
    $region20: #{basis_pooling_pallas.2} parent=1 // pred_region
      _
    $region21: #{basis_pooling_pallas.2} parent=1 // pred_fallthru
      _
    // Predicated region
    $region22: #{basis_pooling_pallas.2} parent=1 // pred_check
      _
    $region23: #{basis_pooling_pallas.2} parent=1 // pred_check_branch
      %65 = sbr.rel (0) target = $region25
    $region24: #{basis_pooling_pallas.2} parent=1 // pred_region
      %66 = dma.done [#allocation23], 16
    $region25: #{basis_pooling_pallas.2} parent=1 // pred_fallthru
      _
    %67 = sfence
    %s69 = ssub.s32 1, 0
    %s70 = smul.u32 64, %s69
    %p71 = scmp.lt.s32.totalorder 0, 0
    %s72 = scalar_select %p71, 0, 0
    %s73 = smul.addr %s72, 4
    %s74 = scalar_lea.vmem %s1, %s73
    %s76 = ssub.s32 1, 0
    %s77 = smul.u32 64, %s76
    %p78 = scmp.lt.s32.totalorder 0, 0
    %s79 = scalar_select %p78, 0, 0
    %s80 = smul.addr %s79, 4
    %s81 = scalar_lea.vmem %s3, %s80
    %s83 = ssub.s32 1, 0
    %s84 = smul.u32 64, %s83
    %p85 = scmp.lt.s32.totalorder 0, 0
    %s86 = scalar_select %p85, 0, 0
    %s87 = smul.addr %s86, 4
    %s88 = scalar_lea.vmem %s4, %s87
    %s90 = ssub.s32 1, 0
    %s91 = smul.u32 64, %s90
    %p92 = scmp.lt.s32.totalorder 0, 0
    %s93 = scalar_select %p92, 0, 0
    %s94 = smul.addr %s93, 4
    %s95 = scalar_lea.vmem %s1, %s94
    %s97 = ssub.s32 1, 0
    %s98 = smul.u32 64, %s97
    %s100 = ssub.s32 1, 0
    %s101 = smul.u32 64, %s100
    %p102 = scmp.lt.s32.totalorder 0, 0
    %s103 = scalar_select %p102, 0, 0
    %s104 = smul.addr %s103, 4
    %s105 = scalar_lea.vmem %s3, %s104
    %s107 = ssub.s32 1, 0
    %s108 = smul.u32 64, %s107
    %s110 = ssub.s32 1, 0
    %s111 = smul.u32 64, %s110
    %p112 = scmp.lt.s32.totalorder 0, 0
    %s113 = scalar_select %p112, 0, 0
    %s114 = smul.addr %s113, 4
    %s115 = scalar_lea.vmem %s4, %s114
    %s117 = ssub.s32 1, 0
    %s118 = smul.u32 64, %s117
    %s119 = ssub.s32 0, 0
    %p120 = scmp.lt.s32.totalorder %s119, 0
    %s121 = scalar_select %p120, 0, 255
    %s122 = sand.u32 15, %s121
    %s123 = sand.u32 15, %s122
    %v124 = vld [vmem:[%s95] sm:%s123]
    %s125 = ssub.s32 0, 0
    %p126 = scmp.lt.s32.totalorder %s125, 0
    %s127 = scalar_select %p126, 0, 255
    %s128 = sand.u32 15, %s127
    %s129 = sand.u32 15, %s128
    %v130 = vld [vmem:[%s105] sm:%s129]
    %s131 = ssub.s32 0, 0
    %p132 = scmp.lt.s32.totalorder %s131, 0
    %s133 = scalar_select %p132, 0, 255
    %s134 = sand.u32 15, %s133
    %s135 = sand.u32 15, %s134
    %v136 = vld [vmem:[%s115] sm:%s135]
    %v137 = vld [vmem:[%s5] sm:$0xf]
    %v138 = vlaneseq
    %v139 = vshrl.u32 %v138, 7
    %vm141 = vcmp.lt.s32.totalorder %v139, 4
    %v142 = vsel %vm141, %v137, %v14
    %143 = xla_tuple %v142, %v13
    %144 = xla_tuple %143
    %v145 = vmax.f32 %v142, %v13
    %146 = xla_tuple %v145
    %147 = xla_tuple %v145, %v12
    %148 = xla_tuple %147
    %v149 = vmax.f32 %v145, %v12
    %150 = xla_tuple %v149
    %151 = xla_tuple %v149, %v11
    %152 = xla_tuple %151
    %v153 = vmax.f32 %v149, %v11
    %154 = xla_tuple %v153
    %156 = vst [vmem:[#allocation24] sm:$0xf] %v153
    %v157 = vlaneseq
    %v158 = vshrl.u32 %v157, 7
    %vm160 = vcmp.lt.s32.totalorder %v158, 4
    %v161 = vsel %vm160, %v136, %v13
    %162 = xla_tuple %v14, %v161
    %163 = xla_tuple %162
    %v164 = vmax.f32 %v14, %v161
    %165 = xla_tuple %v164
    %166 = xla_tuple %v164, %v12
    %167 = xla_tuple %166
    %v168 = vmax.f32 %v164, %v12
    %169 = xla_tuple %v168
    %170 = xla_tuple %v168, %v11
    %171 = xla_tuple %170
    %v172 = vmax.f32 %v168, %v11
    %173 = xla_tuple %v172
    %s174 = scalar_lea.vmem [#allocation24], 4
    %176 = vst [vmem:[%s174] sm:$0xf] %v172
    %v177 = vlaneseq
    %v178 = vshrl.u32 %v177, 7
    %vm180 = vcmp.lt.s32.totalorder %v178, 4
    %v181 = vsel %vm180, %v130, %v12
    %182 = xla_tuple %v14, %v13
    %183 = xla_tuple %182
    %v184 = vmax.f32 %v14, %v13
    %185 = xla_tuple %v184
    %186 = xla_tuple %v184, %v181
    %187 = xla_tuple %186
    %v188 = vmax.f32 %v184, %v181
    %189 = xla_tuple %v188
    %190 = xla_tuple %v188, %v11
    %191 = xla_tuple %190
    %v192 = vmax.f32 %v188, %v11
    %193 = xla_tuple %v192
    %s194 = scalar_lea.vmem [#allocation24], 8
    %196 = vst [vmem:[%s194] sm:$0xf] %v192
    %v197 = vlaneseq
    %v198 = vshrl.u32 %v197, 7
    %vm200 = vcmp.lt.s32.totalorder %v198, 4
    %v201 = vsel %vm200, %v124, %v11
    %202 = xla_tuple %v14, %v13
    %203 = xla_tuple %202
    %v204 = vmax.f32 %v14, %v13
    %205 = xla_tuple %v204
    %206 = xla_tuple %v204, %v12
    %207 = xla_tuple %206
    %v208 = vmax.f32 %v204, %v12
    %209 = xla_tuple %v208
    %210 = xla_tuple %v208, %v201
    %211 = xla_tuple %210
    %v212 = vmax.f32 %v208, %v201
    %213 = xla_tuple %v212
    %s214 = scalar_lea.vmem [#allocation24], 12
    %216 = vst [vmem:[%s214] sm:$0xf] %v212
    %v217 = vld [vmem:[#allocation24] sm:$0xf]
    %s218 = scalar_lea.vmem [#allocation24], 4
    %v219 = vld [vmem:[%s218] sm:$0xf]
    %v220 = vmax.f32 %v217, %v219
    %v221 = vmin.f32 %v217, %v219
    %s222 = scalar_lea.vmem [#allocation24], 8
    %v223 = vld [vmem:[%s222] sm:$0xf]
    %v224 = vmax.f32 %v220, %v223
    %v225 = vmin.f32 %v221, %v223
    %s226 = scalar_lea.vmem [#allocation24], 12
    %v227 = vld [vmem:[%s226] sm:$0xf]
    %v228 = vmax.f32 %v224, %v227
    %v229 = vmin.f32 %v225, %v227
    %s230 = sld [smem:[#allocation22]]
    %v231 = vstv %s230
    %v232 = vmul.f32 %v228, %v231
    %v233 = vmul.f32 %v229, %v231
    %v234 = vmax.f32 %v232, %v233
    %v235 = vmul.f32 %v217, %v231
    %v236 = vsub.f32 %v235, %v234
    %v237 = vmul.f32 %v236, 1.442695
    %v238 = vpow.pop %v237
    %v239 = vmul.f32 %v238, %v217
    %v240 = vmul.f32 %v219, %v231
    %v241 = vsub.f32 %v240, %v234
    %v242 = vmul.f32 %v241, 1.442695
    %v243 = vpow.pop %v242
    %v244 = vadd.f32 %v238, %v243
    %v245 = vmul.f32 %v243, %v219
    %v246 = vadd.f32 %v239, %v245
    %v247 = vmul.f32 %v223, %v231
    %v248 = vsub.f32 %v247, %v234
    %v249 = vmul.f32 %v248, 1.442695
    %v250 = vpow.pop %v249
    %v251 = vadd.f32 %v244, %v250
    %v252 = vmul.f32 %v250, %v223
    %v253 = vadd.f32 %v246, %v252
    %v254 = vmul.f32 %v227, %v231
    %v255 = vsub.f32 %v254, %v234
    %v256 = vmul.f32 %v255, 1.442695
    %v257 = vpow.pop %v256
    %v258 = vadd.f32 %v251, %v257
    %v259 = vmul.f32 %v257, %v227
    %v260 = vadd.f32 %v253, %v259
    %v261 = vrcp.pop %v258
    %v262 = vmul.f32 %v260, %v261
    %263 = vst [vmem:[%s6] sm:$0xf] %v262
    %s264 = sld [smem:[#allocation22 + $0x1]]
    %v265 = vstv %s264
    %v266 = vmul.f32 %v228, %v265
    %v267 = vmul.f32 %v229, %v265
    %v268 = vmax.f32 %v266, %v267
    %v269 = vld [vmem:[#allocation24] sm:$0xf]
    %v270 = vmul.f32 %v269, %v265
    %v271 = vsub.f32 %v270, %v268
    %v272 = vmul.f32 %v271, 1.442695
    %v273 = vpow.pop %v272
    %v274 = vmul.f32 %v273, %v269
    %v275 = vld [vmem:[%s218] sm:$0xf]
    %v276 = vmul.f32 %v275, %v265
    %v277 = vsub.f32 %v276, %v268
    %v278 = vmul.f32 %v277, 1.442695
    %v279 = vpow.pop %v278
    %v280 = vadd.f32 %v273, %v279
    %v281 = vmul.f32 %v279, %v275
    %v282 = vadd.f32 %v274, %v281
    %v283 = vld [vmem:[%s222] sm:$0xf]
    %v284 = vmul.f32 %v283, %v265
    %v285 = vsub.f32 %v284, %v268
    %v286 = vmul.f32 %v285, 1.442695
    %v287 = vpow.pop %v286
    %v288 = vadd.f32 %v280, %v287
    %v289 = vmul.f32 %v287, %v283
    %v290 = vadd.f32 %v282, %v289
    %v291 = vld [vmem:[%s226] sm:$0xf]
    %v292 = vmul.f32 %v291, %v265
    %v293 = vsub.f32 %v292, %v268
    %v294 = vmul.f32 %v293, 1.442695
    %v295 = vpow.pop %v294
    %v296 = vadd.f32 %v288, %v295
    %v297 = vmul.f32 %v295, %v291
    %v298 = vadd.f32 %v290, %v297
    %v299 = vrcp.pop %v296
    %v300 = vmul.f32 %v298, %v299
    %s301 = scalar_lea.vmem %s6, 4
    %302 = vst [vmem:[%s301] sm:$0xf] %v300
    // Predicated region
    $region26: #{basis_pooling_pallas.2} parent=1 // pred_check
      _
    $region27: #{basis_pooling_pallas.2} parent=1 // pred_check_branch
      %304 = sbr.rel (0) target = $region29
    $region28: #{basis_pooling_pallas.2} parent=1 // pred_region
      _
    $region29: #{basis_pooling_pallas.2} parent=1 // pred_fallthru
      _
    // Predicated region
    $region30: #{basis_pooling_pallas.2} parent=1 // pred_check
      _
    $region31: #{basis_pooling_pallas.2} parent=1 // pred_check_branch
      %306 = sbr.rel (0) target = $region33
    $region32: #{basis_pooling_pallas.2} parent=1 // pred_region
      _
    $region33: #{basis_pooling_pallas.2} parent=1 // pred_fallthru
      _
    %307 = vsyncpa [#allocation23], 1

</llo_original>
